<compile_context>
chip_gen: v7x
topology: tpu7x:2x2x1
jax: 0.10.0
libtpu: 0.0.40
codegen_flags: <defaults>
</compile_context>

<pallas_src>
import jax
import jax.numpy as jnp
from jax.experimental import pallas as pl
from jax.experimental.pallas import tpu as pltpu


_MAX_HW_TILE = 16384  # lanes per grid step (multiple of 128); v7x-VMEM safe


def _make_entropy_kernel(kw, kc, hw_total, hw_tile, n_inner, ragged):
    """Fused conv1x1 + two-segment softmax-entropy kernel.

    Refs (after None-dim squeezing):
      w_ref:   (ktot, C)      concatenated [within ; cross/t] weights
      sel_ref: (2, ktot)      0/1 segment selector (f32)
      x_ref:   (C, hw_tile)   slab of the activation reshaped to (N, C, H*W)
      o_ref:   (2, hw_tile)   per-lane partial entropy sums [within, cross]
    """
    ktot = kw + kc

    def kernel(w_ref, sel_ref, x_ref, o_ref):
        o = pl.program_id(1)
        i = pl.program_id(2)

        @pl.when(i == 0)
        def _init():
            o_ref[...] = jnp.zeros_like(o_ref)

        x = x_ref[...]                                           # (C, hw_tile)
        logits = jnp.dot(w_ref[...], x,
                         preferred_element_type=jnp.float32)     # (ktot, hw_tile)

        # Per-segment maxima; the mask is a cheap (ktot, 1) column that
        # broadcasts over lanes inside jnp.where.
        row = jax.lax.broadcasted_iota(jnp.int32, (ktot, 1), 0)
        is_within = row < kw                                     # (ktot, 1)
        m_w = jnp.max(jnp.where(is_within, logits, -jnp.inf),
                      axis=0, keepdims=True)                     # (1, hw_tile)
        m_c = jnp.max(jnp.where(is_within, -jnp.inf, logits),
                      axis=0, keepdims=True)                     # (1, hw_tile)

        # Single exp over the whole block: each row is shifted by its own
        # segment's max, so both segments share one EUP pass.
        m_sel = jnp.where(is_within, m_w, m_c)                   # (ktot, hw_tile)
        z = logits - m_sel
        e = jnp.exp(z)
        ez = e * z

        # Per-segment sums on the (nearly idle) MXU via the 0/1 selector.
        s = jnp.dot(sel_ref[...], e,
                    preferred_element_type=jnp.float32)          # (2, hw_tile)
        num = jnp.dot(sel_ref[...], ez,
                      preferred_element_type=jnp.float32)        # (2, hw_tile)

        # softmax entropy per pixel: H = log(s) - sum(e*z)/s
        ent = jnp.log(s) - num * pl.reciprocal(s, approx=True)   # (2, hw_tile)

        if ragged:
            # Keep the select form: it discards NaN/Inf in padded lanes.
            lane = jax.lax.broadcasted_iota(jnp.int32, (1, hw_tile), 1)
            start = (o * n_inner + i) * hw_tile
            ent = jnp.where(lane < (hw_total - start), ent, 0.0)

        o_ref[...] += ent

    return kernel


def fused_entropy_sums(x3d, w_cat, sel, kw, kc, hw_tile=None):
    """Return (sum_within_entropy, sum_cross_entropy) over all N*H*W pixels.

    x3d:   (N, C, H*W) activation, f32 or bf16
    w_cat: (kw + kc, C) concatenated [within ; cross/t] weights, same dtype
    sel:   (2, kw + kc) f32 0/1 segment selector
    """
    N, C, HW = x3d.shape
    ktot, Cw = w_cat.shape
    assert Cw == C and ktot == kw + kc and sel.shape == (2, ktot)

    if hw_tile is None:
        # Default: one big lane-dense tile (floor of 2048 is automatic: either
        # the whole HW fits, or we use the 16384 cap).
        hw_tile = HW if HW <= _MAX_HW_TILE else _MAX_HW_TILE
    hw_tile = min(hw_tile, HW)
    # Mosaic layout rule: last block dim must be a multiple of 128 unless it
    # spans the whole axis.
    assert hw_tile == HW or hw_tile % 128 == 0, hw_tile

    nhw = pl.cdiv(HW, hw_tile)
    # Second "parallel" grid axis over HW chunks keeps both TensorCores of a
    # v7x chip busy even when N == 1 (race-free: one output block per chunk).
    n_outer = 2 if (nhw % 2 == 0 and nhw >= 2) else 1
    n_inner = nhw // n_outer
    ragged = (HW % hw_tile) != 0

    out = pl.pallas_call(
        _make_entropy_kernel(kw, kc, HW, hw_tile, n_inner, ragged),
        out_shape=jax.ShapeDtypeStruct((N, n_outer, 2, hw_tile), jnp.float32),
        grid_spec=pltpu.PrefetchScalarGridSpec(
            num_scalar_prefetch=0,
            grid=(N, n_outer, n_inner),
            in_specs=[
                pl.BlockSpec((ktot, C), lambda n, o, i: (0, 0)),
                pl.BlockSpec((2, ktot), lambda n, o, i: (0, 0)),
                pl.BlockSpec((None, C, hw_tile),
                             lambda n, o, i: (n, 0, o * n_inner + i)),
            ],
            out_specs=pl.BlockSpec((None, None, 2, hw_tile),
                                   lambda n, o, i: (n, o, 0, 0)),
        ),
        compiler_params=pltpu.CompilerParams(
            dimension_semantics=("parallel", "parallel", "arbitrary")),
    )(w_cat, sel, x3d)

    return jnp.sum(out, axis=(0, 1, 3))   # (2,) = [sum_within, sum_cross]


class EmbeddingLossPallas:
    """JAX/Pallas port of EmbeddingLoss (targets=None, multi-dataset path)."""
    # TODO(synk): the targets!=None `_update_centroids` path and the
    # single-dataset `_self_entropy` path are not implemented here.

    def __init__(self, n_labels, embed_dim, label_embedding):
        assert isinstance(n_labels, dict)
        self.n_labels = n_labels
        self.datasets = list(n_labels.keys())
        self.embed_dim = embed_dim
        self.t = 1.0
        # conv weights = row-wise L2-normalized label embeddings (frozen)
        self.weights = {}
        for d in self.datasets:
            e = label_embedding[d].astype(jnp.float32)            # (K, C)
            self.weights[d] = e / jnp.linalg.norm(e, axis=1, keepdims=True)

    def forward(self, encoder_op, d_set, alpha=0.0, beta=0.0, hw_tile=None):
        # encoder_op: NCHW (f32 or bf16), like the PyTorch module.
        # NOTE: when the producer already emits bf16 the astype below is a
        # no-op, so the HBM-halving comes for free (no standalone cast pass).
        N, C, H, W = encoder_op.shape
        assert C == self.embed_dim
        HW = H * W
        M = N * HW

        dt = jnp.bfloat16 if encoder_op.dtype == jnp.bfloat16 else jnp.float32
        x3d = encoder_op.reshape(N, C, HW).astype(dt)   # free reshape, no transpose

        other = [d for d in self.datasets if d != d_set][0]
        # drop last output channel ([:, :-1]) == drop last weight row;
        # temperature /t folded into the cross weight in f32 BEFORE the cast.
        w_within = self.weights[d_set][:-1]                  # (Kw, C)
        w_cross = self.weights[other][:-1] / self.t          # (Kc, C)
        kw, kc = int(w_within.shape[0]), int(w_cross.shape[0])
        w_cat = jnp.concatenate([w_within, w_cross], axis=0).astype(dt)

        ktot = kw + kc
        rows = jnp.arange(ktot)
        sel = jnp.stack([rows < kw, rows >= kw]).astype(jnp.float32)  # (2, ktot)

        sums = fused_entropy_sums(x3d, w_cat, sel, kw, kc, hw_tile=hw_tile)
        loss_within = sums[0] / M
        loss_cross = sums[1] / M
        return (alpha * loss_cross + beta * loss_within).reshape(-1)


def _reference(encoder_op, weights, d_set, datasets, alpha, beta, t):
    # pure-JAX reference of _similarity for sanity checking (f32)
    def ent(logits):
        p = jax.nn.softmax(logits, axis=1)
        lp = jax.nn.log_softmax(logits, axis=1)
        return jnp.mean(-jnp.sum(lp * p, axis=1))

    other = [d for d in datasets if d != d_set][0]

    def conv(x, w):  # 1x1 conv in NCHW; w: (K, C)
        return jnp.einsum('nchw,kc->nkhw', x.astype(jnp.float32), w)

    lw = ent(conv(encoder_op, weights[d_set])[:, :-1])
    lc = ent(conv(encoder_op, weights[other])[:, :-1] / t)
    return (alpha * lc + beta * lw).reshape(-1)


if __name__ == "__main__":
    key = jax.random.PRNGKey(0)
    k1, k2, k3, k4, k5, k6 = jax.random.split(key, 6)

    embed_dim = 32
    n_labels = {"ds0": 10, "ds1": 12, "ds2": 8}
    # label_embedding[d] has n_labels[d]+1 rows (last channel dropped in forward)
    label_embedding = {
        "ds0": jax.random.normal(k1, (n_labels["ds0"] + 1, embed_dim), jnp.float32),
        "ds1": jax.random.normal(k2, (n_labels["ds1"] + 1, embed_dim), jnp.float32),
        "ds2": jax.random.normal(k3, (n_labels["ds2"] + 1, embed_dim), jnp.float32),
    }
    module = EmbeddingLossPallas(n_labels, embed_dim, label_embedding)
    alpha, beta = 0.3, 0.7

    # 1) f32, single HW tile (HW = 256)
    x1 = jax.random.normal(k4, (2, embed_dim, 16, 16), jnp.float32)
    out1 = jax.block_until_ready(module.forward(x1, "ds0", alpha, beta))
    ref1 = _reference(x1, module.weights, "ds0", module.datasets, alpha, beta, module.t)
    assert out1.shape == (1,)
    assert jnp.allclose(out1, ref1, atol=5e-3, rtol=5e-3), (out1, ref1)

    # 2) f32, multi-tile with ragged tail, odd tile count (HW = 273, tile = 128)
    x2 = jax.random.normal(k5, (2, embed_dim, 13, 21), jnp.float32)
    out2 = jax.block_until_ready(module.forward(x2, "ds1", alpha, beta, hw_tile=128))
    ref2 = _reference(x2, module.weights, "ds1", module.datasets, alpha, beta, module.t)
    assert jnp.allclose(out2, ref2, atol=5e-3, rtol=5e-3), (out2, ref2)

    # 3) f32, even tile count -> exercises the second "parallel" HW axis
    #    (HW = 200, tile = 128 -> n_outer=2, ragged last chunk)
    x3 = jax.random.normal(k6, (2, embed_dim, 10, 20), jnp.float32)
    out3 = jax.block_until_ready(module.forward(x3, "ds2", alpha, beta, hw_tile=128))
    ref3 = _reference(x3, module.weights, "ds2", module.datasets, alpha, beta, module.t)
    assert jnp.allclose(out3, ref3, atol=5e-3, rtol=5e-3), (out3, ref3)

    # 4) bf16 input path (halves activation HBM traffic); looser tolerance vs f32 ref
    out4 = jax.block_until_ready(module.forward(x1.astype(jnp.bfloat16), "ds0", alpha, beta))
    assert jnp.allclose(out4, ref1, atol=5e-2, rtol=5e-2), (out4, ref1)

    print("KERNEL_OK")
</pallas_src>

<mosaic_0001>
module attributes {stable_mosaic.version = 11 : i64} {
  func.func @kernel(%arg0: i32, %arg1: i32, %arg2: i32, %arg3: memref<22x32xf32, #tpu.memory_space<vmem>>, %arg4: memref<2x22xf32, #tpu.memory_space<vmem>>, %arg5: memref<1x32x256xf32, #tpu.memory_space<vmem>>, %arg6: memref<1x1x2x256xf32, #tpu.memory_space<vmem>>) attributes {dimension_semantics = [#tpu.dimension_semantics<parallel>, #tpu.dimension_semantics<parallel>, #tpu.dimension_semantics<arbitrary>], iteration_bounds = array<i64: 2, 1, 1>, scalar_prefetch = 0 : i64, scratch_operands = 0 : i64, tpu.core_type = #tpu.core_type<tc>, window_params = [{pipeline_mode = #tpu.pipeline_mode<synchronous>, transform_indices = @transform_0, window_bounds = array<i64: 22, 32>}, {pipeline_mode = #tpu.pipeline_mode<synchronous>, transform_indices = @transform_1, window_bounds = array<i64: 2, 22>}, {transform_indices = @transform_2, window_bounds = array<i64: 1, 32, 256>}, {transform_indices = @transform_3, window_bounds = array<i64: 1, 1, 2, 256>}]} {
    %c0_i32 = arith.constant 0 : i32
    %0 = arith.cmpi eq, %arg2, %c0_i32 : i32
    %1 = arith.extui %0 : i1 to i32
    %c0_i32_0 = arith.constant 0 : i32
    %2 = arith.cmpi ne, %1, %c0_i32_0 : i32
    scf.if %2 {
      %cst_23 = arith.constant 0.000000e+00 : f32
      %46 = vector.broadcast %cst_23 : f32 to vector<2x256xf32>
      %c0_24 = arith.constant 0 : index
      %c0_25 = arith.constant 0 : index
      %c0_26 = arith.constant 0 : index
      %c0_27 = arith.constant 0 : index
      %47 = vector.load %arg6[%c0_24, %c0_25, %c0_26, %c0_27] : memref<1x1x2x256xf32, #tpu.memory_space<vmem>>, vector<1x1x2x256xf32>
      %48 = vector.shape_cast %47 : vector<1x1x2x256xf32> to vector<2x256xf32>
      %49 = vector.shape_cast %46 : vector<2x256xf32> to vector<1x1x2x256xf32>
      tpu.vector_store %arg6[%c0_24, %c0_25, %c0_26, %c0_27], %49 {strides = array<i32>} : memref<1x1x2x256xf32, #tpu.memory_space<vmem>>, vector<1x1x2x256xf32>,
    } else {
    }
    %c0 = arith.constant 0 : index
    %c0_1 = arith.constant 0 : index
    %c0_2 = arith.constant 0 : index
    %3 = vector.load %arg5[%c0, %c0_1, %c0_2] : memref<1x32x256xf32, #tpu.memory_space<vmem>>, vector<1x32x256xf32>
    %4 = vector.shape_cast %3 : vector<1x32x256xf32> to vector<32x256xf32>
    %c0_3 = arith.constant 0 : index
    %c0_4 = arith.constant 0 : index
    %5 = vector.load %arg3[%c0_3, %c0_4] : memref<22x32xf32, #tpu.memory_space<vmem>>, vector<22x32xf32>
    %cst = arith.constant dense<0.000000e+00> : vector<22x256xf32>
    %6 = tpu.matmul %5, %4, %cst {dimension_numbers = #tpu.dot_dimension_numbers<[1], [0], [0], [1], [0, 0, 1, 1], [], []>} : vector<22x32xf32>, vector<32x256xf32>, vector<22x256xf32> -> vector<22x256xf32>
    %7 = tpu.iota {dimensions = array<i32: 0>} : vector<22x1xi32>
    %c10_i32 = arith.constant 10 : i32
    %8 = vector.broadcast %c10_i32 : i32 to vector<22x1xi32>
    %9 = arith.cmpi slt, %7, %8 : vector<22x1xi32>
    %cst_5 = arith.constant 0xFF800000 : f32
    %10 = vector.shape_cast %9 : vector<22x1xi1> to vector<22x1xi1>
    %11 = vector.broadcast %10 : vector<22x1xi1> to vector<22x256xi1>
    %12 = vector.broadcast %cst_5 : f32 to vector<22x256xf32>
    %13 = arith.select %11, %6, %12 : vector<22x256xi1>, vector<22x256xf32>
    %cst_6 = arith.constant dense<0xFF800000> : vector<256xf32>
    %14 = vector.multi_reduction <maximumf>, %13, %cst_6 [0] : vector<22x256xf32> to vector<256xf32>
    %15 = vector.shape_cast %14 : vector<256xf32> to vector<1x256xf32>
    %cst_7 = arith.constant 0xFF800000 : f32
    %16 = vector.shape_cast %9 : vector<22x1xi1> to vector<22x1xi1>
    %17 = vector.broadcast %16 : vector<22x1xi1> to vector<22x256xi1>
    %18 = vector.broadcast %cst_7 : f32 to vector<22x256xf32>
    %19 = arith.select %17, %18, %6 : vector<22x256xi1>, vector<22x256xf32>
    %cst_8 = arith.constant dense<0xFF800000> : vector<256xf32>
    %20 = vector.multi_reduction <maximumf>, %19, %cst_8 [0] : vector<22x256xf32> to vector<256xf32>
    %21 = vector.shape_cast %20 : vector<256xf32> to vector<1x256xf32>
    %22 = vector.shape_cast %9 : vector<22x1xi1> to vector<22x1xi1>
    %23 = vector.broadcast %22 : vector<22x1xi1> to vector<22x256xi1>
    %24 = vector.shape_cast %15 : vector<1x256xf32> to vector<1x256xf32>
    %25 = vector.broadcast %24 : vector<1x256xf32> to vector<22x256xf32>
    %26 = vector.shape_cast %21 : vector<1x256xf32> to vector<1x256xf32>
    %27 = vector.broadcast %26 : vector<1x256xf32> to vector<22x256xf32>
    %28 = arith.select %23, %25, %27 : vector<22x256xi1>, vector<22x256xf32>
    %29 = arith.subf %6, %28 : vector<22x256xf32>
    %30 = math.exp %29 : vector<22x256xf32>
    %31 = arith.mulf %30, %29 : vector<22x256xf32>
    %c0_9 = arith.constant 0 : index
    %c0_10 = arith.constant 0 : index
    %32 = vector.load %arg4[%c0_9, %c0_10] : memref<2x22xf32, #tpu.memory_space<vmem>>, vector<2x22xf32>
    %cst_11 = arith.constant dense<0.000000e+00> : vector<2x256xf32>
    %33 = tpu.matmul %32, %30, %cst_11 {dimension_numbers = #tpu.dot_dimension_numbers<[1], [0], [0], [1], [0, 0, 1, 1], [], []>} : vector<2x22xf32>, vector<22x256xf32>, vector<2x256xf32> -> vector<2x256xf32>
    %c0_12 = arith.constant 0 : index
    %c0_13 = arith.constant 0 : index
    %34 = vector.load %arg4[%c0_12, %c0_13] : memref<2x22xf32, #tpu.memory_space<vmem>>, vector<2x22xf32>
    %cst_14 = arith.constant dense<0.000000e+00> : vector<2x256xf32>
    %35 = tpu.matmul %34, %31, %cst_14 {dimension_numbers = #tpu.dot_dimension_numbers<[1], [0], [0], [1], [0, 0, 1, 1], [], []>} : vector<2x22xf32>, vector<22x256xf32>, vector<2x256xf32> -> vector<2x256xf32>
    %36 = math.log %33 : vector<2x256xf32>
    %37 = tpu.reciprocal %33 {approx = true} : vector<2x256xf32> -> vector<2x256xf32>
    %38 = arith.mulf %35, %37 : vector<2x256xf32>
    %39 = arith.subf %36, %38 : vector<2x256xf32>
    %c0_15 = arith.constant 0 : index
    %c0_16 = arith.constant 0 : index
    %c0_17 = arith.constant 0 : index
    %c0_18 = arith.constant 0 : index
    %40 = vector.load %arg6[%c0_15, %c0_16, %c0_17, %c0_18] : memref<1x1x2x256xf32, #tpu.memory_space<vmem>>, vector<1x1x2x256xf32>
    %41 = vector.shape_cast %40 : vector<1x1x2x256xf32> to vector<2x256xf32>
    %42 = arith.addf %41, %39 : vector<2x256xf32>
    %c0_19 = arith.constant 0 : index
    %c0_20 = arith.constant 0 : index
    %c0_21 = arith.constant 0 : index
    %c0_22 = arith.constant 0 : index
    %43 = vector.load %arg6[%c0_19, %c0_20, %c0_21, %c0_22] : memref<1x1x2x256xf32, #tpu.memory_space<vmem>>, vector<1x1x2x256xf32>
    %44 = vector.shape_cast %43 : vector<1x1x2x256xf32> to vector<2x256xf32>
    %45 = vector.shape_cast %42 : vector<2x256xf32> to vector<1x1x2x256xf32>
    tpu.vector_store %arg6[%c0_19, %c0_20, %c0_21, %c0_22], %45 {strides = array<i32>} : memref<1x1x2x256xf32, #tpu.memory_space<vmem>>, vector<1x1x2x256xf32>,
    return
  }
  func.func @transform_0(%arg0: i32, %arg1: i32, %arg2: i32) -> (i32, i32) {
    %c0_i32 = arith.constant 0 : i32
    %c0_i32_0 = arith.constant 0 : i32
    %c0_i32_1 = arith.constant 0 : i32
    return %c0_i32, %c0_i32_0 : i32, i32
  }
  func.func @transform_1(%arg0: i32, %arg1: i32, %arg2: i32) -> (i32, i32) {
    %c0_i32 = arith.constant 0 : i32
    %c0_i32_0 = arith.constant 0 : i32
    %c0_i32_1 = arith.constant 0 : i32
    return %c0_i32, %c0_i32_0 : i32, i32
  }
  func.func @transform_2(%arg0: i32, %arg1: i32, %arg2: i32) -> (i32, i32, i32) {
    %c1_i32 = arith.constant 1 : i32
    %0 = arith.muli %arg1, %c1_i32 : i32
    %1 = arith.addi %0, %arg2 : i32
    %c0_i32 = arith.constant 0 : i32
    %c0_i32_0 = arith.constant 0 : i32
    return %arg0, %c0_i32, %1 : i32, i32, i32
  }
  func.func @transform_3(%arg0: i32, %arg1: i32, %arg2: i32) -> (i32, i32, i32, i32) {
    %c0_i32 = arith.constant 0 : i32
    %c0_i32_0 = arith.constant 0 : i32
    %c0_i32_1 = arith.constant 0 : i32
    return %arg0, %arg1, %c0_i32, %c0_i32_0 : i32, i32, i32, i32
  }
}

</mosaic_0001>

<llo_original>
// kernel: tpu_custom_call.1
$region0: #{tpu_custom_call.1}
  #allocation0 [shape = 'u32[]', space=smem, size = 0x4, offset = 0x4, fixed_abs, tag = 'smem constant byte address 0x4 - core index']
  #allocation1 [shape = 'u32[144,128]{1,0:T(1,128)}', space=vmem, size = 0x12000, scoped, tag = 'internal scratch']
  %s0 = inlined_call_operand.hbm [shape: f32[22,32], index: 0, kind: input, shape index: {}]
  %s1 = inlined_call_operand.vmem [shape: f32[2,22], index: 1, kind: input, shape index: {}]
  %s2 = inlined_call_operand.hbm [shape: f32[2,32,256], index: 2, kind: input, shape index: {}]
  %s3 = inlined_call_operand.hbm [shape: f32[2,1,2,256], index: 3, kind: output, shape index: {}]
  %s4 = sld [smem:[#allocation0]]
  $region57: #{tpu_custom_call.1} parent=0
    _
  %s6 = ssub.s32 1, %s4
  %s7 = scalar_select 0, %s6, %s4
  $region1: #{tpu_custom_call.1} parent=0
    #allocation2 [shape = 'u8[12288]{0}', space=vmem, size = 0x3000, scoped, tag = 'input window, operand 0, single buffered']
    #allocation3 [shape = 's32[2]{0}', space=sflag, size = 0x8, scoped, tag = 'scoped memory for tpu_custom_call.1']
    #allocation4 [shape = 's32[2]{0}', space=sflag, size = 0x8, scoped, tag = 'scoped memory for tpu_custom_call.1']
    #allocation5 [shape = 'u8[65536]{0}', space=vmem, size = 0x10000, scoped, tag = 'input window, operand 2']
    #allocation6 [shape = 's32[2]{0}', space=sflag, size = 0x8, scoped, tag = 'scoped memory for tpu_custom_call.1']
    #allocation7 [shape = 'u8[4096]{0}', space=vmem, size = 0x1000, scoped, tag = 'output window, operand 0']
    %8 = vsyncpa [#allocation3], 0
    %9 = vsyncpa [#allocation6], 0
    %s10 = scalar_lea.sflag [#allocation6], 1
    %11 = vsyncpa %s10, 0
    %12 = vsyncpa [#allocation4], 0
    %s13 = scalar_lea.sflag [#allocation4], 1
    %14 = vsyncpa %s13, 0
    loop: start=0, step=1, limit=4
    $region2: #{tpu_custom_call.1} parent=1 // loop_pre_header
      _
    $region3: #{tpu_custom_call.1} parent=1 // loop_header
      %s16 = sphi 0, %s20
      %p17 = scmp.ge.s32.totalorder %s16, 4
      %s23 = sphi 0, %s42
      %s24 = sphi 0, %s38
      %s25 = sphi 0, %s34
      %s26 = sphi 0, %s23
      %s27 = sphi 0, %s24
      %s28 = sphi 0, %s25
      %s29 = sphi 0, %s26
      %s30 = sphi 0, %s27
      %s31 = sphi 0, %s28
      %s43 = sphi 0, %s43
      %s45 = sphi 0, %s43
      %s46 = sphi 0, %s45
      %s60 = sphi 0, %s46
      %s64 = sphi 0, %s64
      %s66 = sphi 0, %s64
      %s67 = sphi 0, %s66
      %s81 = sphi 0, %s67
      %s91 = sphi 0, %s93
      %s94 = sphi 0, %s91
      %s95 = sphi 0, %s94
      %s111 = sphi 0, %s95
      %s119 = sphi 0, %s121
      %s122 = sphi 0, %s119
      %s123 = sphi 0, %s122
      %s139 = sphi 0, %s123
    $region4: #{tpu_custom_call.1} parent=1 // loop_header_branch
      %19 = sbr.rel (%p17) target = $region8
    $region5: #{tpu_custom_call.1} parent=1 // loop_body
      %s21 = ssub.s32 %s16, 1
      %s22 = ssub.s32 %s16, 2
      %s32 = sadd.s32 1, %s25
      %p33 = scmp.ge.s32.totalorder %s32, 1
      %s34 = scalar_select %p33, 0, %s32
      %s35 = sadd.s32 1, %s24
      %s36 = scalar_select %p33, %s35, %s24
      %p37 = scmp.ge.s32.totalorder %s36, 1
      %s38 = scalar_select %p37, 0, %s36
      %s39 = sadd.s32 1, %s23
      %s40 = scalar_select %p37, %s39, %s23
      %p41 = scmp.ge.s32.totalorder %s40, 2
      %s42 = scalar_select %p41, 0, %s40
      %s44 = sadd.s32 %s43, 1
      %p47 = scmp.eq.s32.totalorder %s16, 1
      %p48 = scmp.ne.s32.totalorder %s43, %s45
      %p49 = scmp.eq.s32.totalorder %s16, 0
      %p50 = por %p48, %p49
      %p51 = scmp.ne.s32.totalorder %s43, %s45
      %p52 = scmp.eq.s32.totalorder %s21, 1
      %p53 = por %p51, %p52
      %p54 = scmp.ne.s32.totalorder %s45, %s46
      %p55 = scmp.eq.s32.totalorder %s21, 0
      %p56 = por %p54, %p55
      %p57 = scmp.ne.s32.totalorder %s45, %s46
      %p58 = scmp.eq.s32.totalorder %s22, 1
      %p59 = por %p57, %p58
      %p61 = scmp.ne.s32.totalorder %s46, %s60
      %p62 = scmp.eq.s32.totalorder %s22, 0
      %p63 = por %p61, %p62
      %s65 = sadd.s32 %s64, 1
      %p68 = scmp.eq.s32.totalorder %s16, 1
      %p69 = scmp.ne.s32.totalorder %s64, %s66
      %p70 = scmp.eq.s32.totalorder %s16, 0
      %p71 = por %p69, %p70
      %p72 = scmp.ne.s32.totalorder %s64, %s66
      %p73 = scmp.eq.s32.totalorder %s21, 1
      %p74 = por %p72, %p73
      %p75 = scmp.ne.s32.totalorder %s66, %s67
      %p76 = scmp.eq.s32.totalorder %s21, 0
      %p77 = por %p75, %p76
      %p78 = scmp.ne.s32.totalorder %s66, %s67
      %p79 = scmp.eq.s32.totalorder %s22, 1
      %p80 = por %p78, %p79
      %p82 = scmp.ne.s32.totalorder %s67, %s81
      %p83 = scmp.eq.s32.totalorder %s22, 0
      %p84 = por %p82, %p83
      %s85 = sadd.s32 %s24, %s25
      %s86 = sadd.s32 %s38, %s34
      %s87 = ssub.s32 %s23, %s42
      %s88 = ssub.s32 %s85, %s86
      %s89 = sor.u32 %s87, %s88
      %p90 = scmp.eq.s32.totalorder %s89, 0
      %s92 = sadd.s32 %s91, 1
      %s93 = scalar_select %p90, %s91, %s92
      %p96 = pneg %p90
      %p97 = scmp.eq.s32.totalorder %s16, 1
      %p98 = por %p96, %p97
      %p99 = scmp.ne.s32.totalorder %s91, %s94
      %p100 = scmp.eq.s32.totalorder %s16, 0
      %p101 = por %p99, %p100
      %p102 = scmp.ne.s32.totalorder %s91, %s94
      %p103 = scmp.eq.s32.totalorder %s21, 1
      %p104 = por %p102, %p103
      %p105 = scmp.ne.s32.totalorder %s94, %s95
      %p106 = scmp.eq.s32.totalorder %s21, 0
      %p107 = por %p105, %p106
      %p108 = scmp.ne.s32.totalorder %s94, %s95
      %p109 = scmp.eq.s32.totalorder %s22, 1
      %p110 = por %p108, %p109
      %p112 = scmp.ne.s32.totalorder %s95, %s111
      %p113 = scmp.eq.s32.totalorder %s22, 0
      %p114 = por %p112, %p113
      %s115 = ssub.s32 %s23, %s42
      %s116 = ssub.s32 %s24, %s38
      %s117 = sor.u32 %s115, %s116
      %p118 = scmp.eq.s32.totalorder %s117, 0
      %s120 = sadd.s32 %s119, 1
      %s121 = scalar_select %p118, %s119, %s120
      %p124 = pneg %p118
      %p125 = scmp.eq.s32.totalorder %s16, 1
      %p126 = por %p124, %p125
      %p127 = scmp.ne.s32.totalorder %s119, %s122
      %p128 = scmp.eq.s32.totalorder %s16, 0
      %p129 = por %p127, %p128
      %p130 = scmp.ne.s32.totalorder %s119, %s122
      %p131 = scmp.eq.s32.totalorder %s21, 1
      %p132 = por %p130, %p131
      %p133 = scmp.ne.s32.totalorder %s122, %s123
      %p134 = scmp.eq.s32.totalorder %s21, 0
      %p135 = por %p133, %p134
      %p136 = scmp.ne.s32.totalorder %s122, %s123
      %p137 = scmp.eq.s32.totalorder %s22, 1
      %p138 = por %p136, %p137
      %p140 = scmp.ne.s32.totalorder %s123, %s139
      %p141 = scmp.eq.s32.totalorder %s22, 0
      %p142 = por %p140, %p141
      %p143 = scmp.le.s32.totalorder 1, %s16
      %p144 = scmp.lt.s32.totalorder %s16, 3
      %p145 = pnand %p143, %p144
      %p146 = pneg %p145
      // Predicated region
      $region9: #{tpu_custom_call.1} parent=5 // pred_check
        _
      $region10: #{tpu_custom_call.1} parent=5 // pred_check_branch
        %148 = sbr.rel (%p145) target = $region12
      $region11: #{tpu_custom_call.1} parent=5 // pred_region
        %s149 = ssub.s32 %s16, 1
        // Predicated region
        $region13: #{tpu_custom_call.1} parent=11 // pred_check
          %p150 = pneg %p56
        $region14: #{tpu_custom_call.1} parent=11 // pred_check_branch
          %152 = sbr.rel (%p150) target = $region16
        $region15: #{tpu_custom_call.1} parent=11 // pred_region
          %s154 = ssub.s32 384, 384
          %155 = vsyncadd [#allocation3], %s154
          %s156 = sshll.u32 [#allocation2], 4
          %s157 = int_to_ptr.vmem [resolvable:$true] %s156
          %162 = dma.hbm_to_vmem [thread:$0]  %s0, 384, %s157, [#allocation3], 128, 128, 8
        $region16: #{tpu_custom_call.1} parent=11 // pred_fallthru
          _
        // Predicated region
        $region17: #{tpu_custom_call.1} parent=11 // pred_check
          %p163 = pneg %p77
        $region18: #{tpu_custom_call.1} parent=11 // pred_check_branch
          %165 = sbr.rel (%p163) target = $region20
        $region19: #{tpu_custom_call.1} parent=11 // pred_region
          _
        $region20: #{tpu_custom_call.1} parent=11 // pred_fallthru
          _
      $region12: #{tpu_custom_call.1} parent=5 // pred_fallthru
        _
      %p166 = scmp.lt.s32.totalorder %s16, 2
      // Predicated region
      $region21: #{tpu_custom_call.1} parent=5 // pred_check
        %p167 = pneg %p166
      $region22: #{tpu_custom_call.1} parent=5 // pred_check_branch
        %169 = sbr.rel (%p167) target = $region24
      $region23: #{tpu_custom_call.1} parent=5 // pred_region
        // Predicated region
        $region25: #{tpu_custom_call.1} parent=23 // pred_check
          %p170 = pneg %p101
        $region26: #{tpu_custom_call.1} parent=23 // pred_check_branch
          %172 = sbr.rel (%p170) target = $region28
        $region27: #{tpu_custom_call.1} parent=23 // pred_region
          %s173 = sand.u32 %s91, 1
          %s174 = scalar_lea.sflag [#allocation6], %s173
          %s175 = sand.u32 %s91, 1
          %s176 = smul.addr %s175, 64
          %s177 = scalar_lea.vmem [#allocation5], %s176
          %s178 = sadd.s32 %s24, %s25
          %s179 = smul.u32 2, %s178
          %s181 = ssub.s32 1024, 1024
          %182 = vsyncadd %s174, %s181
          %s183 = smul.addr %s23, 8
          %s184 = sadd.s32 %s179, %s183
          %s185 = smul.addr %s184, 128
          %s186 = scalar_lea.hbm %s2, %s185
          %s187 = sshll.u32 %s177, 4
          %s188 = int_to_ptr.vmem [resolvable:$true] %s187
          %193 = dma.hbm_to_vmem [thread:$0]  %s186, 1024, %s188, %s174, 256, 256, 16
        $region28: #{tpu_custom_call.1} parent=23 // pred_fallthru
          _
      $region24: #{tpu_custom_call.1} parent=5 // pred_fallthru
        _
      %p194 = scmp.le.s32.totalorder 1, %s16
      %p195 = scmp.lt.s32.totalorder %s16, 3
      %p196 = pnand %p194, %p195
      %p197 = pneg %p196
      // Predicated region
      $region29: #{tpu_custom_call.1} parent=5 // pred_check
        _
      $region30: #{tpu_custom_call.1} parent=5 // pred_check_branch
        %199 = sbr.rel (%p196) target = $region32
      $region31: #{tpu_custom_call.1} parent=5 // pred_region
        %s200 = ssub.s32 %s16, 1
        // Predicated region
        $region33: #{tpu_custom_call.1} parent=31 // pred_check
          %p201 = pneg %p56
        $region34: #{tpu_custom_call.1} parent=31 // pred_check_branch
          %203 = sbr.rel (%p201) target = $region36
        $region35: #{tpu_custom_call.1} parent=31 // pred_region
          %204 = dma.done [#allocation3], 384
        $region36: #{tpu_custom_call.1} parent=31 // pred_fallthru
          _
        %s205 = sand.u32 %s94, 1
        %s206 = scalar_lea.sflag [#allocation6], %s205
        %s207 = sand.u32 %s94, 1
        %s208 = smul.addr %s207, 64
        %s209 = scalar_lea.vmem [#allocation5], %s208
        // Predicated region
        $region37: #{tpu_custom_call.1} parent=31 // pred_check
          %p210 = pneg %p107
        $region38: #{tpu_custom_call.1} parent=31 // pred_check_branch
          %212 = sbr.rel (%p210) target = $region40
        $region39: #{tpu_custom_call.1} parent=31 // pred_region
          %213 = dma.done %s206, 1024
        $region40: #{tpu_custom_call.1} parent=31 // pred_fallthru
          _
        %p214 = pneg %p56
        %p215 = pneg %p53
        %p216 = pneg %p77
        %p217 = pneg %p74
        %s218 = sand.u32 %s94, 1
        %s219 = scalar_lea.sflag [#allocation6], %s218
        %s220 = sand.u32 %s94, 1
        %s221 = smul.addr %s220, 64
        %s222 = scalar_lea.vmem [#allocation5], %s221
        %p223 = pneg %p107
        %p224 = pneg %p104
        %p225 = pneg %p135
        %p226 = pneg %p132
        %s227 = sand.u32 %s122, 1
        %s228 = scalar_lea.sflag [#allocation4], %s227
        %s229 = sand.u32 %s122, 1
        %s230 = smul.addr %s229, 4
        %s231 = scalar_lea.vmem [#allocation7], %s230
        %s232 = sadd.s32 %s27, %s28
        %s233 = smul.u32 2, %s232
        %p234 = scmp.eq.s32.totalorder %s28, 0
        // Predicated region
        $region41: #{tpu_custom_call.1} parent=31 // pred_check
          %p235 = pneg %p234
        $region42: #{tpu_custom_call.1} parent=31 // pred_check_branch
          %237 = sbr.rel (%p235) target = $region44
        $region43: #{tpu_custom_call.1} parent=31 // pred_region
          %238 = vst [vmem:[%s231] sm:$0xf] 0.0
        $region44: #{tpu_custom_call.1} parent=31 // pred_fallthru
          _
        %v239 = vld [vmem:[%s209] sm:$0xff]
        %v240 = vld [vmem:[%s209 + $0x8] sm:$0xff]
        %v241 = vld [vmem:[%s209 + $0x10] sm:$0xff]
        %v242 = vld [vmem:[%s209 + $0x18] sm:$0xff]
        %v243 = vld [vmem:[%s209 + $0x20] sm:$0xff]
        %v244 = vld [vmem:[%s209 + $0x28] sm:$0xff]
        %v245 = vld [vmem:[%s209 + $0x30] sm:$0xff]
        %v246 = vld [vmem:[%s209 + $0x38] sm:$0xff]
        %v247 = vld [vmem:[#allocation2] sm:$0xff]
        %v248 = vld [vmem:[#allocation2 + $0x8] sm:$0xff]
        %v249 = vld [vmem:[#allocation2 + $0x10] sm:$0x3f]
        %vm250 = vcmask 261120
        %v252 = vsel %vm250, %v247, 0
        %v255 = vsel %vm250, %v248, 0
        %v258 = vsel %vm250, %v249, 0
        %260 = vmatprep.subr.mxu0 %v240
        %261 = vmatpush1.msra.mxu0 %v239
        %262 = vmatprep.subr.mxu0 %v242
        %263 = vmatpush1.msra.mxu0 %v241
        %264 = vmatprep.subr.mxu0 %v244
        %265 = vmatpush1.msra.mxu0 %v243
        %266 = vmatprep.subr.mxu0 %v246
        %267 = vmatpush1.msra.mxu0 %v245
        %268 = vmatprep.subr.mxu0 0.0
        %269 = vmatpush1.msra.mxu0 0.0
        %270 = vmatprep.subr.mxu0 0.0
        %271 = vmatpush1.msra.mxu0 0.0
        %272 = vmatprep.subr.mxu0 0.0
        %273 = vmatpush1.msra.mxu0 0.0
        %274 = vmatprep.subr.mxu0 0.0
        %275 = vmatpush1.msra.mxu0 0.0
        %276 = vmatprep.subr.mxu0 0.0
        %277 = vmatpush1.msra.mxu0 0.0
        %278 = vmatprep.subr.mxu0 0.0
        %279 = vmatpush1.msra.mxu0 0.0
        %280 = vmatprep.subr.mxu0 0.0
        %281 = vmatpush1.msra.mxu0 0.0
        %282 = vmatprep.subr.mxu0 0.0
        %283 = vmatpush1.msra.mxu0 0.0
        %284 = vmatprep.subr.mxu0 0.0
        %285 = vmatpush1.msra.mxu0 0.0
        %286 = vmatprep.subr.mxu0 0.0
        %287 = vmatpush1.msra.mxu0 0.0
        %288 = vmatprep.subr.mxu0 0.0
        %289 = vmatpush1.msra.mxu0 0.0
        %290 = vmatprep.subr.mxu0 0.0
        %291 = vmatpush1.msra.mxu0 0.0
        %292 = vmatprep.subr.mxu0 0.0
        %293 = vmatpush1.msra.mxu0 0.0
        %294 = vmatprep.subr.mxu0 0.0
        %295 = vmatpush1.msra.mxu0 0.0
        %296 = vmatprep.subr.mxu0 0.0
        %297 = vmatpush1.msra.mxu0 0.0
        %298 = vmatprep.subr.mxu0 0.0
        %299 = vmatpush1.msra.mxu0 0.0
        %300 = vmatprep.subr.mxu0 0.0
        %301 = vmatpush1.msra.mxu0 0.0
        %302 = vmatprep.subr.mxu0 0.0
        %303 = vmatpush1.msra.mxu0 0.0
        %304 = vmatprep.subr.mxu0 0.0
        %305 = vmatpush1.msra.mxu0 0.0
        %306 = vmatprep.subr.mxu0 0.0
        %307 = vmatpush1.msra.mxu0 0.0
        %308 = vmatprep.subr.mxu0 0.0
        %309 = vmatpush1.msra.mxu0 0.0
        %310 = vmatprep.subr.mxu0 0.0
        %311 = vmatpush1.msra.mxu0 0.0
        %312 = vmatprep.subr.mxu0 0.0
        %313 = vmatpush1.msra.mxu0 0.0
        %314 = vmatprep.subr.mxu0 0.0
        %315 = vmatpush1.msra.mxu0 0.0
        %316 = vmatprep.subr.mxu0 0.0
        %317 = vmatpush1.msra.mxu0 0.0
        %318 = vmatprep.subr.mxu0 0.0
        %319 = vmatpush1.msra.mxu0 0.0
        %320 = vmatprep.subr.mxu0 0.0
        %321 = vmatpush1.msra.mxu0 0.0
        %322 = vmatprep.subr.mxu0 0.0
        %323 = vmatpush1.msra.mxu0 0.0
        %324 = vmatprep.mubr.f32.mxu0 0.0
        %325 = vmatmul.mubr.f32.gmra.mrb[0].mxu0 %v252
        %v326 = vpop.f32.mrb[0].mxu0
        %v327 = vadd.f32 0.0, %v326
        %v328 = vpop.f32.mrb[0].mxu0
        %v329 = vadd.f32 0.0, %v328
        %330 = vmatprep.mubr.f32.mxu0 0.0
        %331 = vmatmul.mubr.f32.gmra.mrb[0].mxu0 %v255
        %v332 = vpop.f32.mrb[0].mxu0
        %v333 = vadd.f32 0.0, %v332
        %v334 = vpop.f32.mrb[0].mxu0
        %v335 = vadd.f32 0.0, %v334
        %336 = vmatprep.mubr.f32.mxu0 0.0
        %337 = vmatmul.mubr.f32.gmra.mrb[0].mxu0 %v258
        %v338 = vpop.f32.mrb[0].mxu0
        %v339 = vadd.f32 0.0, %v338
        %v340 = vpop.f32.mrb[0].mxu0
        %v341 = vadd.f32 0.0, %v340
        %342 = vdwg.mxu0
        %v343 = vlaneseq
        %v344 = vshrl.u32 %v343, 7
        %v345 = vadd.s32 %v344, 8
        %v346 = vadd.s32 %v344, 16
        %vm347 = vcmp.lt.s32.totalorder %v344, 10
        %vm348 = vcmp.lt.s32.totalorder %v345, 10
        %vm349 = vcmp.lt.s32.totalorder %v346, 10
        %v350 = vsel %vm347, 1, 0
        %v351 = vsel %vm348, 1, 0
        %v352 = vsel %vm349, 1, 0
        %vm353 = vcmp.eq.s32.totalorder %v350, 1
        %vm354 = vcmp.eq.s32.totalorder %v351, 1
        %vm355 = vcmp.eq.s32.totalorder %v352, 1
        %v356 = vsel %vm353, %v327, -inf
        %v357 = vsel %vm353, %v329, -inf
        %v358 = vsel %vm354, %v333, -inf
        %v359 = vsel %vm354, %v335, -inf
        %v360 = vsel %vm355, %v339, -inf
        %v361 = vsel %vm355, %v341, -inf
        %vm362 = vcmask 1045504
        %v363 = vsel %vm362, %v360, -inf
        %v364 = vmax.f32 %v356, %v363
        %v365 = vmax.f32 %v364, %v358
        %v366 = vrot.slane %v365, 4
        %v367 = vmax.f32 %v365, %v366
        %v368 = vrot.slane %v367, 2
        %v369 = vmax.f32 %v367, %v368
        %v370 = vrot.slane %v369, 1
        %v371 = vmax.f32 %v369, %v370
        %v372 = vsel %vm362, %v361, -inf
        %v373 = vmax.f32 %v357, %v372
        %v374 = vmax.f32 %v373, %v359
        %v375 = vrot.slane %v374, 4
        %v376 = vmax.f32 %v374, %v375
        %v377 = vrot.slane %v376, 2
        %v378 = vmax.f32 %v376, %v377
        %v379 = vrot.slane %v378, 1
        %v380 = vmax.f32 %v378, %v379
        %v381 = vsel %vm353, -inf, %v327
        %v382 = vsel %vm353, -inf, %v329
        %v383 = vsel %vm354, -inf, %v333
        %v384 = vsel %vm354, -inf, %v335
        %v385 = vsel %vm355, -inf, %v339
        %v386 = vsel %vm355, -inf, %v341
        %v387 = vsel %vm362, %v385, -inf
        %v388 = vmax.f32 %v381, %v387
        %v389 = vmax.f32 %v388, %v383
        %v390 = vrot.slane %v389, 4
        %v391 = vmax.f32 %v389, %v390
        %v392 = vrot.slane %v391, 2
        %v393 = vmax.f32 %v391, %v392
        %v394 = vrot.slane %v393, 1
        %v395 = vmax.f32 %v393, %v394
        %v396 = vsel %vm362, %v386, -inf
        %v397 = vmax.f32 %v382, %v396
        %v398 = vmax.f32 %v397, %v384
        %v399 = vrot.slane %v398, 4
        %v400 = vmax.f32 %v398, %v399
        %v401 = vrot.slane %v400, 2
        %v402 = vmax.f32 %v400, %v401
        %v403 = vrot.slane %v402, 1
        %v404 = vmax.f32 %v402, %v403
        %v405 = vsel %vm353, %v371, %v395
        %v406 = vsel %vm353, %v380, %v404
        %v407 = vsel %vm354, %v371, %v395
        %v408 = vsel %vm354, %v380, %v404
        %v409 = vsel %vm355, %v371, %v395
        %v410 = vsel %vm355, %v380, %v404
        %v411 = vsub.f32 %v327, %v405
        %v412 = vsub.f32 %v329, %v406
        %v413 = vsub.f32 %v333, %v407
        %v414 = vsub.f32 %v335, %v408
        %v415 = vsub.f32 %v339, %v409
        %v416 = vsub.f32 %v341, %v410
        %v417 = vmul.f32 %v411, 1.442695
        %v418 = vpow.pop %v417
        %v419 = vmul.f32 %v412, 1.442695
        %v420 = vpow.pop %v419
        %v421 = vmul.f32 %v413, 1.442695
        %v422 = vpow.pop %v421
        %v423 = vmul.f32 %v414, 1.442695
        %v424 = vpow.pop %v423
        %v425 = vmul.f32 %v415, 1.442695
        %v426 = vpow.pop %v425
        %v427 = vmul.f32 %v416, 1.442695
        %v428 = vpow.pop %v427
        %v429 = vmul.f32 %v418, %v411
        %v430 = vmul.f32 %v420, %v412
        %v431 = vmul.f32 %v422, %v413
        %v432 = vmul.f32 %v424, %v414
        %v433 = vmul.f32 %v426, %v415
        %v434 = vmul.f32 %v428, %v416
        %v435 = vld [vmem:[%s1] sm:$0x3]
        %vm436 = vcmask 179200
        %v438 = vsel %vm436, %v435, 0
        %v441 = vsel %vm362, %v426, 0
        %v444 = vsel %vm362, %v428, 0
        %446 = vmatprep.subr.mxu0 %v420
        %447 = vmatpush1.msra.mxu0 %v418
        %448 = vmatprep.subr.mxu0 %v424
        %449 = vmatpush1.msra.mxu0 %v422
        %450 = vmatprep.subr.mxu0 %v444
        %451 = vmatpush1.msra.mxu0 %v441
        %452 = vmatprep.subr.mxu0 0.0
        %453 = vmatpush1.msra.mxu0 0.0
        %454 = vmatprep.subr.mxu0 0.0
        %455 = vmatpush1.msra.mxu0 0.0
        %456 = vmatprep.subr.mxu0 0.0
        %457 = vmatpush1.msra.mxu0 0.0
        %458 = vmatprep.subr.mxu0 0.0
        %459 = vmatpush1.msra.mxu0 0.0
        %460 = vmatprep.subr.mxu0 0.0
        %461 = vmatpush1.msra.mxu0 0.0
        %462 = vmatprep.subr.mxu0 0.0
        %463 = vmatpush1.msra.mxu0 0.0
        %464 = vmatprep.subr.mxu0 0.0
        %465 = vmatpush1.msra.mxu0 0.0
        %466 = vmatprep.subr.mxu0 0.0
        %467 = vmatpush1.msra.mxu0 0.0
        %468 = vmatprep.subr.mxu0 0.0
        %469 = vmatpush1.msra.mxu0 0.0
        %470 = vmatprep.subr.mxu0 0.0
        %471 = vmatpush1.msra.mxu0 0.0
        %472 = vmatprep.subr.mxu0 0.0
        %473 = vmatpush1.msra.mxu0 0.0
        %474 = vmatprep.subr.mxu0 0.0
        %475 = vmatpush1.msra.mxu0 0.0
        %476 = vmatprep.subr.mxu0 0.0
        %477 = vmatpush1.msra.mxu0 0.0
        %478 = vmatprep.subr.mxu0 0.0
        %479 = vmatpush1.msra.mxu0 0.0
        %480 = vmatprep.subr.mxu0 0.0
        %481 = vmatpush1.msra.mxu0 0.0
        %482 = vmatprep.subr.mxu0 0.0
        %483 = vmatpush1.msra.mxu0 0.0
        %484 = vmatprep.subr.mxu0 0.0
        %485 = vmatpush1.msra.mxu0 0.0
        %486 = vmatprep.subr.mxu0 0.0
        %487 = vmatpush1.msra.mxu0 0.0
        %488 = vmatprep.subr.mxu0 0.0
        %489 = vmatpush1.msra.mxu0 0.0
        %490 = vmatprep.subr.mxu0 0.0
        %491 = vmatpush1.msra.mxu0 0.0
        %492 = vmatprep.subr.mxu0 0.0
        %493 = vmatpush1.msra.mxu0 0.0
        %494 = vmatprep.subr.mxu0 0.0
        %495 = vmatpush1.msra.mxu0 0.0
        %496 = vmatprep.subr.mxu0 0.0
        %497 = vmatpush1.msra.mxu0 0.0
        %498 = vmatprep.subr.mxu0 0.0
        %499 = vmatpush1.msra.mxu0 0.0
        %500 = vmatprep.subr.mxu0 0.0
        %501 = vmatpush1.msra.mxu0 0.0
        %502 = vmatprep.subr.mxu0 0.0
        %503 = vmatpush1.msra.mxu0 0.0
        %504 = vmatprep.subr.mxu0 0.0
        %505 = vmatpush1.msra.mxu0 0.0
        %506 = vmatprep.subr.mxu0 0.0
        %507 = vmatpush1.msra.mxu0 0.0
        %508 = vmatprep.subr.mxu0 0.0
        %509 = vmatpush1.msra.mxu0 0.0
        %510 = vmatprep.mubr.f32.mxu0 0.0
        %511 = vmatmul.mubr.f32.gmra.mrb[0].mxu0 %v438
        %v512 = vpop.f32.mrb[0].mxu0
        %v513 = vadd.f32 0.0, %v512
        %v514 = vpop.f32.mrb[0].mxu0
        %v515 = vadd.f32 0.0, %v514
        %516 = vdwg.mxu0
        %v518 = vsel %vm362, %v433, 0
        %v521 = vsel %vm362, %v434, 0
        %523 = vmatprep.subr.mxu0 %v430
        %524 = vmatpush1.msra.mxu0 %v429
        %525 = vmatprep.subr.mxu0 %v432
        %526 = vmatpush1.msra.mxu0 %v431
        %527 = vmatprep.subr.mxu0 %v521
        %528 = vmatpush1.msra.mxu0 %v518
        %529 = vmatprep.subr.mxu0 0.0
        %530 = vmatpush1.msra.mxu0 0.0
        %531 = vmatprep.subr.mxu0 0.0
        %532 = vmatpush1.msra.mxu0 0.0
        %533 = vmatprep.subr.mxu0 0.0
        %534 = vmatpush1.msra.mxu0 0.0
        %535 = vmatprep.subr.mxu0 0.0
        %536 = vmatpush1.msra.mxu0 0.0
        %537 = vmatprep.subr.mxu0 0.0
        %538 = vmatpush1.msra.mxu0 0.0
        %539 = vmatprep.subr.mxu0 0.0
        %540 = vmatpush1.msra.mxu0 0.0
        %541 = vmatprep.subr.mxu0 0.0
        %542 = vmatpush1.msra.mxu0 0.0
        %543 = vmatprep.subr.mxu0 0.0
        %544 = vmatpush1.msra.mxu0 0.0
        %545 = vmatprep.subr.mxu0 0.0
        %546 = vmatpush1.msra.mxu0 0.0
        %547 = vmatprep.subr.mxu0 0.0
        %548 = vmatpush1.msra.mxu0 0.0
        %549 = vmatprep.subr.mxu0 0.0
        %550 = vmatpush1.msra.mxu0 0.0
        %551 = vmatprep.subr.mxu0 0.0
        %552 = vmatpush1.msra.mxu0 0.0
        %553 = vmatprep.subr.mxu0 0.0
        %554 = vmatpush1.msra.mxu0 0.0
        %555 = vmatprep.subr.mxu0 0.0
        %556 = vmatpush1.msra.mxu0 0.0
        %557 = vmatprep.subr.mxu0 0.0
        %558 = vmatpush1.msra.mxu0 0.0
        %559 = vmatprep.subr.mxu0 0.0
        %560 = vmatpush1.msra.mxu0 0.0
        %561 = vmatprep.subr.mxu0 0.0
        %562 = vmatpush1.msra.mxu0 0.0
        %563 = vmatprep.subr.mxu0 0.0
        %564 = vmatpush1.msra.mxu0 0.0
        %565 = vmatprep.subr.mxu0 0.0
        %566 = vmatpush1.msra.mxu0 0.0
        %567 = vmatprep.subr.mxu0 0.0
        %568 = vmatpush1.msra.mxu0 0.0
        %569 = vmatprep.subr.mxu0 0.0
        %570 = vmatpush1.msra.mxu0 0.0
        %571 = vmatprep.subr.mxu0 0.0
        %572 = vmatpush1.msra.mxu0 0.0
        %573 = vmatprep.subr.mxu0 0.0
        %574 = vmatpush1.msra.mxu0 0.0
        %575 = vmatprep.subr.mxu0 0.0
        %576 = vmatpush1.msra.mxu0 0.0
        %577 = vmatprep.subr.mxu0 0.0
        %578 = vmatpush1.msra.mxu0 0.0
        %579 = vmatprep.subr.mxu0 0.0
        %580 = vmatpush1.msra.mxu0 0.0
        %581 = vmatprep.subr.mxu0 0.0
        %582 = vmatpush1.msra.mxu0 0.0
        %583 = vmatprep.subr.mxu0 0.0
        %584 = vmatpush1.msra.mxu0 0.0
        %585 = vmatprep.subr.mxu0 0.0
        %586 = vmatpush1.msra.mxu0 0.0
        %587 = vmatprep.mubr.f32.mxu0 0.0
        %588 = vmatmul.mubr.f32.gmra.mrb[0].mxu0 %v438
        %v589 = vpop.f32.mrb[0].mxu0
        %v590 = vadd.f32 0.0, %v589
        %v591 = vpop.f32.mrb[0].mxu0
        %v592 = vadd.f32 0.0, %v591
        %593 = vdwg.mxu0
        %v594 = vlog2.pop %v513
        %v595 = vmul.f32 %v594, 0.6931472
        %v596 = vlog2.pop %v515
        %v597 = vmul.f32 %v596, 0.6931472
        %v598 = vrcp.pop %v513
        %v599 = vrcp.pop %v515
        %v600 = vmul.f32 %v590, %v598
        %v601 = vmul.f32 %v592, %v599
        %v602 = vsub.f32 %v595, %v600
        %v603 = vsub.f32 %v597, %v601
        %v604 = vld [vmem:[%s231] sm:$0xf]
        %v607 = vcombine.low %v602, %v603
        %v609 = vunpack.c.l.s4 1983009808
        %v610 = vunpack.c.0.s8 %v609
        %v611 = vlaneseq
        %v612 = vshrl.u32 %v611, 7
        %v613 = vsub.s32 %v610, %v612
        %v614 = vrot.slane %v607, %v613
        %v616 = vadd.f32 %v604, %v614
        %617 = vst [vmem:[%s231] sm:$0xf] %v616
        %s618 = sand.u32 %s122, 1
        %s619 = scalar_lea.sflag [#allocation4], %s618
        %s620 = sand.u32 %s122, 1
        %s621 = smul.addr %s620, 4
        %s622 = scalar_lea.vmem [#allocation7], %s621
        // Predicated region
        $region45: #{tpu_custom_call.1} parent=31 // pred_check
          %p623 = pneg %p132
        $region46: #{tpu_custom_call.1} parent=31 // pred_check_branch
          %625 = sbr.rel (%p623) target = $region48
        $region47: #{tpu_custom_call.1} parent=31 // pred_region
          %s627 = ssub.s32 64, 64
          %628 = vsyncadd %s619, %s627
          %s629 = smul.addr %s27, 2
          %s630 = smul.addr %s26, 2
          %s631 = sadd.s32 %s629, %s630
          %s632 = smul.addr %s631, 32
          %s633 = scalar_lea.hbm %s3, %s632
          %s635 = sshll.u32 %s622, 4
          %s636 = int_to_ptr.vmem [resolvable:$true] %s635
          %638 = dma.vmem_to_hbm [thread:$0]  %s636, 64, %s633, %s619
        $region48: #{tpu_custom_call.1} parent=31 // pred_fallthru
          _
      $region32: #{tpu_custom_call.1} parent=5 // pred_fallthru
        _
      %p639 = scmp.le.s32.totalorder 2, %s16
      // Predicated region
      $region49: #{tpu_custom_call.1} parent=5 // pred_check
        %p640 = pneg %p639
      $region50: #{tpu_custom_call.1} parent=5 // pred_check_branch
        %642 = sbr.rel (%p640) target = $region52
      $region51: #{tpu_custom_call.1} parent=5 // pred_region
        %s643 = ssub.s32 %s16, 2
        // Predicated region
        $region53: #{tpu_custom_call.1} parent=51 // pred_check
          %p644 = pneg %p138
        $region54: #{tpu_custom_call.1} parent=51 // pred_check_branch
          %646 = sbr.rel (%p644) target = $region56
        $region55: #{tpu_custom_call.1} parent=51 // pred_region
          %s647 = sand.u32 %s123, 1
          %s648 = scalar_lea.sflag [#allocation4], %s647
          %s649 = sand.u32 %s123, 1
          %s650 = smul.addr %s649, 4
          %s651 = scalar_lea.vmem [#allocation7], %s650
          %652 = dma.done %s648, 64
        $region56: #{tpu_custom_call.1} parent=51 // pred_fallthru
          _
      $region52: #{tpu_custom_call.1} parent=5 // pred_fallthru
        _
    $region6: #{tpu_custom_call.1} parent=1 // loop_footer
      %s20 = sadd.s32 1, %s16
    $region7: #{tpu_custom_call.1} parent=1 // loop_footer_branch
      %15 = sbr.rel target = $region3
    $region8: #{tpu_custom_call.1} parent=1 // loop_exit
      _
    %653 = vsyncpa [#allocation3], 1
    %s654 = scalar_lea.sflag [#allocation3], 1
    %655 = vsyncpa %s654, 1
    %656 = vsyncpa [#allocation6], 1
    %s657 = scalar_lea.sflag [#allocation6], 1
    %658 = vsyncpa %s657, 1
    %659 = vsyncpa [#allocation4], 1
    %s660 = scalar_lea.sflag [#allocation4], 1
    %661 = vsyncpa %s660, 1

</llo_original>
